<compile_context>
chip_gen: v6e
topology: v6e:2x2x1
jax: 0.10.0
libtpu: 0.0.40
codegen_flags: <defaults>
</compile_context>

<pallas_src>
import jax
import jax.numpy as jnp
from jax.experimental import pallas as pl
from jax.experimental.pallas import tpu as pltpu

BN_EPS = 1e-5
OUT_PAD = 128   # lane-dense padded output width (true output_dim sliced in wrapper)


def _bn_relu(h, bn_ref):
    """Training-mode BatchNorm1d (batch mean, biased var) fused with ReLU.

    bn_ref is a (2, H) ref: row 0 = gamma, row 1 = beta.
    """
    mean = jnp.mean(h, axis=0, keepdims=True)                       # (1, H)
    var = jnp.mean(h * h, axis=0, keepdims=True) - mean * mean      # (1, H)
    scale = bn_ref[0, :] * jax.lax.rsqrt(var + BN_EPS)               # (1, H)
    return jnp.maximum((h - mean) * scale + bn_ref[1, :], 0.0)


def regressor_kernel(latent_ref, class_bias_ref,
                     w1_ref, bn1_ref, w2_ref, bn2_ref, w3_ref,
                     out_ref):
    x = latent_ref[...]                                              # (B, latent_dim)

    # Linear 1 (bias dropped: cancelled by BN mean) + fused BN + ReLU.
    h1 = jnp.dot(x, w1_ref[...], preferred_element_type=jnp.float32)
    h1 = _bn_relu(h1, bn1_ref)

    # Linear 2 (bias dropped) + fused BN + ReLU.
    h2 = jnp.dot(h1, w2_ref[...], preferred_element_type=jnp.float32)
    h2 = _bn_relu(h2, bn2_ref)

    # concat([h2, onehot]) @ W3 + b3 == h2 @ W3a + (onehot @ W3b + b3);
    # the second term arrives precomputed, lane-padded to 128.
    logits = (jnp.dot(h2, w3_ref[...], preferred_element_type=jnp.float32)
              + class_bias_ref[...])
    out_ref[...] = jax.nn.sigmoid(logits)


def furniture_size_regressor(latent_vec, class_onehot, kernel_params, output_dim=3):
    (w1, bn1, w2, bn2, w3a_pad, w3b_pad, b3_pad) = kernel_params
    B, latent_dim = latent_vec.shape
    H0 = w1.shape[1]
    H1 = w2.shape[1]

    # Fold the tiny, data-independent one-hot matmul + b3 into a single
    # (B, OUT_PAD) additive term so the kernel never pushes a (B,C)x(C,3) tile
    # through the MXU.
    class_bias = class_onehot @ w3b_pad + b3_pad                     # (B, OUT_PAD)

    args = (latent_vec, class_bias, w1, bn1, w2, bn2, w3a_pad)

    in_specs = [pl.BlockSpec(a.shape, lambda *_, n=a.ndim: (0,) * n)
                for a in args]

    in_bytes = sum(int(a.size) * a.dtype.itemsize for a in args)
    out_bytes = B * OUT_PAD * 4
    flops = (2 * B * (latent_dim * H0 + H0 * H1 + H1 * OUT_PAD)
             + 10 * B * (H0 + H1) + 4 * B * OUT_PAD)
    transcendentals = B * OUT_PAD + H0 + H1          # sigmoid exps + BN rsqrts
    vmem_limit = max(4 * (in_bytes + out_bytes), 2 * 1024 * 1024)

    out_padded = pl.pallas_call(
        regressor_kernel,
        out_shape=jax.ShapeDtypeStruct((B, OUT_PAD), jnp.float32),
        grid=(1,),
        in_specs=in_specs,
        out_specs=pl.BlockSpec((B, OUT_PAD), lambda *_: (0, 0)),
        compiler_params=pltpu.CompilerParams(
            dimension_semantics=("arbitrary",),
            vmem_limit_bytes=int(vmem_limit)),
        cost_estimate=pl.CostEstimate(
            flops=flops,
            transcendentals=transcendentals,
            bytes_accessed=in_bytes + out_bytes),
    )(*args)

    return out_padded[:, :output_dim]


def init_params(key, latent_dim, class_count, hidden_dims=(256, 64), output_dim=3):
    ks = jax.random.split(key, 10)
    h0, h1 = hidden_dims

    # PyTorch-layout parameters; Linear weights stored pre-transposed (in, out).
    w1 = jax.random.normal(ks[0], (latent_dim, h0), jnp.float32) * 0.1
    b1 = jax.random.normal(ks[1], (1, h0), jnp.float32) * 0.05   # dead under train-mode BN
    g1 = 1.0 + 0.1 * jax.random.normal(ks[2], (h0,), jnp.float32)
    be1 = 0.1 * jax.random.normal(ks[3], (h0,), jnp.float32)

    w2 = jax.random.normal(ks[4], (h0, h1), jnp.float32) * 0.1
    b2 = jax.random.normal(ks[5], (1, h1), jnp.float32) * 0.05   # dead under train-mode BN
    g2 = 1.0 + 0.1 * jax.random.normal(ks[6], (h1,), jnp.float32)
    be2 = 0.1 * jax.random.normal(ks[7], (h1,), jnp.float32)

    w3 = jax.random.normal(ks[8], (h1 + class_count, output_dim), jnp.float32) * 0.1
    b3 = jax.random.normal(ks[9], (1, output_dim), jnp.float32) * 0.05
    w3a, w3b = w3[:h1, :], w3[h1:, :]

    # Kernel-side packed / lane-padded parameters.
    bn1 = jnp.stack([g1, be1])                                   # (2, h0)
    bn2 = jnp.stack([g2, be2])                                   # (2, h1)
    w3a_pad = jnp.zeros((h1, OUT_PAD), jnp.float32).at[:, :output_dim].set(w3a)
    w3b_pad = jnp.zeros((class_count, OUT_PAD), jnp.float32).at[:, :output_dim].set(w3b)
    b3_pad = jnp.zeros((1, OUT_PAD), jnp.float32).at[:, :output_dim].set(b3)

    kernel_params = (w1, bn1, w2, bn2, w3a_pad, w3b_pad, b3_pad)
    ref_params = (w1, b1, g1, be1, w2, b2, g2, be2, w3a, w3b, b3)
    return kernel_params, ref_params


def reference_forward(latent_vec, class_onehot, ref_params):
    """Pure-JAX mirror of PyTorch forward (training-mode BatchNorm1d, with
    the Linear biases kept non-zero to verify they cancel exactly)."""
    (w1, b1, g1, be1, w2, b2, g2, be2, w3a, w3b, b3) = ref_params

    def bn(h, gamma, beta):
        mean = jnp.mean(h, axis=0, keepdims=True)
        var = jnp.mean((h - mean) ** 2, axis=0, keepdims=True)   # biased variance
        return (h - mean) * jax.lax.rsqrt(var + BN_EPS) * gamma + beta

    h1 = jnp.maximum(bn(latent_vec @ w1 + b1, g1, be1), 0.0)
    h2 = jnp.maximum(bn(h1 @ w2 + b2, g2, be2), 0.0)
    return jax.nn.sigmoid(h2 @ w3a + class_onehot @ w3b + b3)


if __name__ == "__main__":
    B = 8
    latent_dim = 32
    class_count = 4
    key = jax.random.PRNGKey(0)
    k_lat, k_cls, k_par = jax.random.split(key, 3)

    latent_vec = jax.random.normal(k_lat, (B, latent_dim), jnp.float32)
    cls_idx = jax.random.randint(k_cls, (B,), 0, class_count)
    class_onehot = jax.nn.one_hot(cls_idx, class_count, dtype=jnp.float32)

    kernel_params, ref_params = init_params(k_par, latent_dim, class_count)

    out = furniture_size_regressor(latent_vec, class_onehot, kernel_params)
    out = jax.block_until_ready(out)

    ref = reference_forward(latent_vec, class_onehot, ref_params)
    assert out.shape == (B, 3)
    assert jnp.allclose(out, ref, atol=1e-5, rtol=1e-5)
    print("KERNEL_OK")
</pallas_src>

<mosaic_0001>
module attributes {stable_mosaic.version = 11 : i64} {
  func.func @regressor_kernel(%arg0: i32, %arg1: memref<8x32xf32, #tpu.memory_space<vmem>>, %arg2: memref<8x128xf32, #tpu.memory_space<vmem>>, %arg3: memref<32x256xf32, #tpu.memory_space<vmem>>, %arg4: memref<2x256xf32, #tpu.memory_space<vmem>>, %arg5: memref<256x64xf32, #tpu.memory_space<vmem>>, %arg6: memref<2x64xf32, #tpu.memory_space<vmem>>, %arg7: memref<64x128xf32, #tpu.memory_space<vmem>>, %arg8: memref<8x128xf32, #tpu.memory_space<vmem>>) attributes {dimension_semantics = [#tpu.dimension_semantics<arbitrary>], iteration_bounds = array<i64: 1>, scalar_prefetch = 0 : i64, scratch_operands = 0 : i64, tpu.core_type = #tpu.core_type<tc>, window_params = [{pipeline_mode = #tpu.pipeline_mode<synchronous>, transform_indices = @transform_0, window_bounds = array<i64: 8, 32>}, {pipeline_mode = #tpu.pipeline_mode<synchronous>, transform_indices = @transform_1, window_bounds = array<i64: 8, 128>}, {pipeline_mode = #tpu.pipeline_mode<synchronous>, transform_indices = @transform_2, window_bounds = array<i64: 32, 256>}, {pipeline_mode = #tpu.pipeline_mode<synchronous>, transform_indices = @transform_3, window_bounds = array<i64: 2, 256>}, {pipeline_mode = #tpu.pipeline_mode<synchronous>, transform_indices = @transform_4, window_bounds = array<i64: 256, 64>}, {pipeline_mode = #tpu.pipeline_mode<synchronous>, transform_indices = @transform_5, window_bounds = array<i64: 2, 64>}, {pipeline_mode = #tpu.pipeline_mode<synchronous>, transform_indices = @transform_6, window_bounds = array<i64: 64, 128>}, {pipeline_mode = #tpu.pipeline_mode<synchronous>, transform_indices = @transform_7, window_bounds = array<i64: 8, 128>}]} {
    %c0 = arith.constant 0 : index
    %c0_0 = arith.constant 0 : index
    %0 = vector.load %arg1[%c0, %c0_0] : memref<8x32xf32, #tpu.memory_space<vmem>>, vector<8x32xf32>
    %c0_1 = arith.constant 0 : index
    %c0_2 = arith.constant 0 : index
    %1 = vector.load %arg3[%c0_1, %c0_2] : memref<32x256xf32, #tpu.memory_space<vmem>>, vector<32x256xf32>
    %cst = arith.constant dense<0.000000e+00> : vector<8x256xf32>
    %2 = tpu.matmul %0, %1, %cst {dimension_numbers = #tpu.dot_dimension_numbers<[1], [0], [0], [1], [0, 0, 1, 1], [], []>} : vector<8x32xf32>, vector<32x256xf32>, vector<8x256xf32> -> vector<8x256xf32>
    %cst_3 = arith.constant dense<0.000000e+00> : vector<256xf32>
    %3 = vector.multi_reduction <add>, %2, %cst_3 [0] : vector<8x256xf32> to vector<256xf32>
    %4 = vector.shape_cast %3 : vector<256xf32> to vector<1x256xf32>
    %cst_4 = arith.constant 8.000000e+00 : f32
    %5 = vector.broadcast %cst_4 : f32 to vector<1x256xf32>
    %6 = arith.divf %4, %5 : vector<1x256xf32>
    %7 = arith.mulf %2, %2 : vector<8x256xf32>
    %cst_5 = arith.constant dense<0.000000e+00> : vector<256xf32>
    %8 = vector.multi_reduction <add>, %7, %cst_5 [0] : vector<8x256xf32> to vector<256xf32>
    %9 = vector.shape_cast %8 : vector<256xf32> to vector<1x256xf32>
    %cst_6 = arith.constant 8.000000e+00 : f32
    %10 = vector.broadcast %cst_6 : f32 to vector<1x256xf32>
    %11 = arith.divf %9, %10 : vector<1x256xf32>
    %12 = arith.mulf %6, %6 : vector<1x256xf32>
    %13 = arith.subf %11, %12 : vector<1x256xf32>
    %c0_7 = arith.constant 0 : index
    %c0_8 = arith.constant 0 : index
    %14 = vector.load %arg4[%c0_7, %c0_8] : memref<2x256xf32, #tpu.memory_space<vmem>>, vector<1x256xf32>
    %15 = vector.shape_cast %14 : vector<1x256xf32> to vector<256xf32>
    %cst_9 = arith.constant 9.99999974E-6 : f32
    %16 = vector.broadcast %cst_9 : f32 to vector<1x256xf32>
    %17 = arith.addf %13, %16 : vector<1x256xf32>
    %18 = math.rsqrt %17 : vector<1x256xf32>
    %19 = vector.shape_cast %15 : vector<256xf32> to vector<1x256xf32>
    %20 = arith.mulf %19, %18 : vector<1x256xf32>
    %21 = vector.broadcast %6 : vector<1x256xf32> to vector<8x256xf32>
    %22 = arith.subf %2, %21 : vector<8x256xf32>
    %23 = vector.broadcast %20 : vector<1x256xf32> to vector<8x256xf32>
    %24 = arith.mulf %22, %23 : vector<8x256xf32>
    %c1 = arith.constant 1 : index
    %c0_10 = arith.constant 0 : index
    %25 = vector.load %arg4[%c1, %c0_10] : memref<2x256xf32, #tpu.memory_space<vmem>>, vector<1x256xf32>
    %26 = vector.shape_cast %25 : vector<1x256xf32> to vector<256xf32>
    %27 = vector.shape_cast %26 : vector<256xf32> to vector<1x256xf32>
    %28 = vector.broadcast %27 : vector<1x256xf32> to vector<8x256xf32>
    %29 = arith.addf %24, %28 : vector<8x256xf32>
    %cst_11 = arith.constant 0.000000e+00 : f32
    %30 = vector.broadcast %cst_11 : f32 to vector<8x256xf32>
    %31 = arith.maximumf %29, %30 : vector<8x256xf32>
    %c0_12 = arith.constant 0 : index
    %c0_13 = arith.constant 0 : index
    %32 = vector.load %arg5[%c0_12, %c0_13] : memref<256x64xf32, #tpu.memory_space<vmem>>, vector<256x64xf32>
    %cst_14 = arith.constant dense<0.000000e+00> : vector<8x64xf32>
    %33 = tpu.matmul %31, %32, %cst_14 {dimension_numbers = #tpu.dot_dimension_numbers<[1], [0], [0], [1], [0, 0, 1, 1], [], []>} : vector<8x256xf32>, vector<256x64xf32>, vector<8x64xf32> -> vector<8x64xf32>
    %cst_15 = arith.constant dense<0.000000e+00> : vector<64xf32>
    %34 = vector.multi_reduction <add>, %33, %cst_15 [0] : vector<8x64xf32> to vector<64xf32>
    %35 = vector.shape_cast %34 : vector<64xf32> to vector<1x64xf32>
    %cst_16 = arith.constant 8.000000e+00 : f32
    %36 = vector.broadcast %cst_16 : f32 to vector<1x64xf32>
    %37 = arith.divf %35, %36 : vector<1x64xf32>
    %38 = arith.mulf %33, %33 : vector<8x64xf32>
    %cst_17 = arith.constant dense<0.000000e+00> : vector<64xf32>
    %39 = vector.multi_reduction <add>, %38, %cst_17 [0] : vector<8x64xf32> to vector<64xf32>
    %40 = vector.shape_cast %39 : vector<64xf32> to vector<1x64xf32>
    %cst_18 = arith.constant 8.000000e+00 : f32
    %41 = vector.broadcast %cst_18 : f32 to vector<1x64xf32>
    %42 = arith.divf %40, %41 : vector<1x64xf32>
    %43 = arith.mulf %37, %37 : vector<1x64xf32>
    %44 = arith.subf %42, %43 : vector<1x64xf32>
    %c0_19 = arith.constant 0 : index
    %c0_20 = arith.constant 0 : index
    %45 = vector.load %arg6[%c0_19, %c0_20] : memref<2x64xf32, #tpu.memory_space<vmem>>, vector<1x64xf32>
    %46 = vector.shape_cast %45 : vector<1x64xf32> to vector<64xf32>
    %cst_21 = arith.constant 9.99999974E-6 : f32
    %47 = vector.broadcast %cst_21 : f32 to vector<1x64xf32>
    %48 = arith.addf %44, %47 : vector<1x64xf32>
    %49 = math.rsqrt %48 : vector<1x64xf32>
    %50 = vector.shape_cast %46 : vector<64xf32> to vector<1x64xf32>
    %51 = arith.mulf %50, %49 : vector<1x64xf32>
    %52 = vector.broadcast %37 : vector<1x64xf32> to vector<8x64xf32>
    %53 = arith.subf %33, %52 : vector<8x64xf32>
    %54 = vector.broadcast %51 : vector<1x64xf32> to vector<8x64xf32>
    %55 = arith.mulf %53, %54 : vector<8x64xf32>
    %c1_22 = arith.constant 1 : index
    %c0_23 = arith.constant 0 : index
    %56 = vector.load %arg6[%c1_22, %c0_23] : memref<2x64xf32, #tpu.memory_space<vmem>>, vector<1x64xf32>
    %57 = vector.shape_cast %56 : vector<1x64xf32> to vector<64xf32>
    %58 = vector.shape_cast %57 : vector<64xf32> to vector<1x64xf32>
    %59 = vector.broadcast %58 : vector<1x64xf32> to vector<8x64xf32>
    %60 = arith.addf %55, %59 : vector<8x64xf32>
    %cst_24 = arith.constant 0.000000e+00 : f32
    %61 = vector.broadcast %cst_24 : f32 to vector<8x64xf32>
    %62 = arith.maximumf %60, %61 : vector<8x64xf32>
    %c0_25 = arith.constant 0 : index
    %c0_26 = arith.constant 0 : index
    %63 = vector.load %arg7[%c0_25, %c0_26] : memref<64x128xf32, #tpu.memory_space<vmem>>, vector<64x128xf32>
    %cst_27 = arith.constant dense<0.000000e+00> : vector<8x128xf32>
    %64 = tpu.matmul %62, %63, %cst_27 {dimension_numbers = #tpu.dot_dimension_numbers<[1], [0], [0], [1], [0, 0, 1, 1], [], []>} : vector<8x64xf32>, vector<64x128xf32>, vector<8x128xf32> -> vector<8x128xf32>
    %c0_28 = arith.constant 0 : index
    %c0_29 = arith.constant 0 : index
    %65 = vector.load %arg2[%c0_28, %c0_29] : memref<8x128xf32, #tpu.memory_space<vmem>>, vector<8x128xf32>
    %66 = arith.addf %64, %65 : vector<8x128xf32>
    %67 = arith.negf %66 : vector<8x128xf32>
    %68 = math.exp %67 : vector<8x128xf32>
    %cst_30 = arith.constant 1.000000e+00 : f32
    %69 = vector.broadcast %cst_30 : f32 to vector<8x128xf32>
    %70 = arith.addf %69, %68 : vector<8x128xf32>
    %71 = arith.divf %69, %70 : vector<8x128xf32>
    %c0_31 = arith.constant 0 : index
    %c0_32 = arith.constant 0 : index
    %72 = vector.load %arg8[%c0_31, %c0_32] : memref<8x128xf32, #tpu.memory_space<vmem>>, vector<8x128xf32>
    tpu.vector_store %arg8[%c0_31, %c0_32], %71 {strides = array<i32>} : memref<8x128xf32, #tpu.memory_space<vmem>>, vector<8x128xf32>,
    return
  }
  func.func @transform_0(%arg0: i32) -> (i32, i32) {
    %c0_i32 = arith.constant 0 : i32
    %c0_i32_0 = arith.constant 0 : i32
    %c0_i32_1 = arith.constant 0 : i32
    return %c0_i32, %c0_i32_0 : i32, i32
  }
  func.func @transform_1(%arg0: i32) -> (i32, i32) {
    %c0_i32 = arith.constant 0 : i32
    %c0_i32_0 = arith.constant 0 : i32
    %c0_i32_1 = arith.constant 0 : i32
    return %c0_i32, %c0_i32_0 : i32, i32
  }
  func.func @transform_2(%arg0: i32) -> (i32, i32) {
    %c0_i32 = arith.constant 0 : i32
    %c0_i32_0 = arith.constant 0 : i32
    %c0_i32_1 = arith.constant 0 : i32
    return %c0_i32, %c0_i32_0 : i32, i32
  }
  func.func @transform_3(%arg0: i32) -> (i32, i32) {
    %c0_i32 = arith.constant 0 : i32
    %c0_i32_0 = arith.constant 0 : i32
    %c0_i32_1 = arith.constant 0 : i32
    return %c0_i32, %c0_i32_0 : i32, i32
  }
  func.func @transform_4(%arg0: i32) -> (i32, i32) {
    %c0_i32 = arith.constant 0 : i32
    %c0_i32_0 = arith.constant 0 : i32
    %c0_i32_1 = arith.constant 0 : i32
    return %c0_i32, %c0_i32_0 : i32, i32
  }
  func.func @transform_5(%arg0: i32) -> (i32, i32) {
    %c0_i32 = arith.constant 0 : i32
    %c0_i32_0 = arith.constant 0 : i32
    %c0_i32_1 = arith.constant 0 : i32
    return %c0_i32, %c0_i32_0 : i32, i32
  }
  func.func @transform_6(%arg0: i32) -> (i32, i32) {
    %c0_i32 = arith.constant 0 : i32
    %c0_i32_0 = arith.constant 0 : i32
    %c0_i32_1 = arith.constant 0 : i32
    return %c0_i32, %c0_i32_0 : i32, i32
  }
  func.func @transform_7(%arg0: i32) -> (i32, i32) {
    %c0_i32 = arith.constant 0 : i32
    %c0_i32_0 = arith.constant 0 : i32
    %c0_i32_1 = arith.constant 0 : i32
    return %c0_i32, %c0_i32_0 : i32, i32
  }
}

</mosaic_0001>

<llo_original>
// kernel: tpu_custom_call.1
$region0: #{tpu_custom_call.1}
  #allocation0 [shape = 'u32[]', space=smem, size = 0x4, offset = 0x4, fixed_abs, tag = 'smem constant byte address 0x4 - core index']
  #allocation1 [shape = 'u32[144,128]{1,0:T(1,128)}', space=vmem, size = 0x12000, scoped, tag = 'internal scratch']
  %s0 = inlined_call_operand.vmem [shape: f32[8,32], index: 0, kind: input, shape index: {}]
  %s1 = inlined_call_operand.vmem [shape: f32[8,128], index: 1, kind: input, shape index: {}]
  %s2 = inlined_call_operand.vmem [shape: f32[32,256], index: 2, kind: input, shape index: {}]
  %s3 = inlined_call_operand.vmem [shape: f32[2,256], index: 3, kind: input, shape index: {}]
  %s4 = inlined_call_operand.vmem [shape: f32[256,64], index: 4, kind: input, shape index: {}]
  %s5 = inlined_call_operand.vmem [shape: f32[2,64], index: 5, kind: input, shape index: {}]
  %s6 = inlined_call_operand.vmem [shape: f32[64,128], index: 6, kind: input, shape index: {}]
  %s7 = inlined_call_operand.hbm [shape: f32[8,128], index: 7, kind: output, shape index: {}]
  %s8 = sld [smem:[#allocation0]]
  $region38: #{tpu_custom_call.1} parent=0
    _
  %s10 = ssub.s32 1, %s8
  %s11 = scalar_select 0, %s10, %s8
  $region1: #{tpu_custom_call.1} parent=0
    #allocation2 [shape = 'u8[4096]{0}', space=vmem, size = 0x1000, scoped, tag = 'output window, operand 0, single buffered']
    #allocation3 [shape = 's32[1]{0}', space=sflag, size = 0x4, scoped, tag = 'scoped memory for tpu_custom_call.1']
    %12 = vsyncpa [#allocation3], 0
    // Predicated region
    $region2: #{tpu_custom_call.1} parent=1 // pred_check
      _
    $region3: #{tpu_custom_call.1} parent=1 // pred_check_branch
      %14 = sbr.rel (0) target = $region5
    $region4: #{tpu_custom_call.1} parent=1 // pred_region
      _
    $region5: #{tpu_custom_call.1} parent=1 // pred_fallthru
      _
    // Predicated region
    $region6: #{tpu_custom_call.1} parent=1 // pred_check
      _
    $region7: #{tpu_custom_call.1} parent=1 // pred_check_branch
      %16 = sbr.rel (0) target = $region9
    $region8: #{tpu_custom_call.1} parent=1 // pred_region
      _
    $region9: #{tpu_custom_call.1} parent=1 // pred_fallthru
      _
    // Predicated region
    $region10: #{tpu_custom_call.1} parent=1 // pred_check
      _
    $region11: #{tpu_custom_call.1} parent=1 // pred_check_branch
      %18 = sbr.rel (0) target = $region13
    $region12: #{tpu_custom_call.1} parent=1 // pred_region
      _
    $region13: #{tpu_custom_call.1} parent=1 // pred_fallthru
      _
    // Predicated region
    $region14: #{tpu_custom_call.1} parent=1 // pred_check
      _
    $region15: #{tpu_custom_call.1} parent=1 // pred_check_branch
      %20 = sbr.rel (0) target = $region17
    $region16: #{tpu_custom_call.1} parent=1 // pred_region
      _
    $region17: #{tpu_custom_call.1} parent=1 // pred_fallthru
      _
    // Predicated region
    $region18: #{tpu_custom_call.1} parent=1 // pred_check
      _
    $region19: #{tpu_custom_call.1} parent=1 // pred_check_branch
      %22 = sbr.rel (0) target = $region21
    $region20: #{tpu_custom_call.1} parent=1 // pred_region
      _
    $region21: #{tpu_custom_call.1} parent=1 // pred_fallthru
      _
    // Predicated region
    $region22: #{tpu_custom_call.1} parent=1 // pred_check
      _
    $region23: #{tpu_custom_call.1} parent=1 // pred_check_branch
      %24 = sbr.rel (0) target = $region25
    $region24: #{tpu_custom_call.1} parent=1 // pred_region
      _
    $region25: #{tpu_custom_call.1} parent=1 // pred_fallthru
      _
    // Predicated region
    $region26: #{tpu_custom_call.1} parent=1 // pred_check
      _
    $region27: #{tpu_custom_call.1} parent=1 // pred_check_branch
      %26 = sbr.rel (0) target = $region29
    $region28: #{tpu_custom_call.1} parent=1 // pred_region
      _
    $region29: #{tpu_custom_call.1} parent=1 // pred_fallthru
      _
    %v27 = vld [vmem:[%s0] sm:$0xff]
    %v28 = vld [vmem:[%s2] sm:$0xff]
    %v29 = vld [vmem:[%s2 + $0x8] sm:$0xff]
    %v30 = vld [vmem:[%s2 + $0x10] sm:$0xff]
    %v31 = vld [vmem:[%s2 + $0x18] sm:$0xff]
    %v32 = vld [vmem:[%s2 + $0x20] sm:$0xff]
    %v33 = vld [vmem:[%s2 + $0x28] sm:$0xff]
    %v34 = vld [vmem:[%s2 + $0x30] sm:$0xff]
    %v35 = vld [vmem:[%s2 + $0x38] sm:$0xff]
    %vm36 = vcmask 261120
    %v38 = vsel %vm36, %v27, 0
    %40 = vmatprep.subr.mxu0 0.0
    %41 = vmatpush1.msra.mxu0 0.0
    %42 = vmatprep.subr.mxu0 0.0
    %43 = vmatpush1.msra.mxu0 0.0
    %44 = vmatprep.subr.mxu0 0.0
    %45 = vmatpush1.msra.mxu0 0.0
    %46 = vmatprep.subr.mxu0 0.0
    %47 = vmatpush1.msra.mxu0 0.0
    %48 = vmatprep.subr.mxu0 0.0
    %49 = vmatpush1.msra.mxu0 0.0
    %50 = vmatprep.subr.mxu0 0.0
    %51 = vmatpush1.msra.mxu0 0.0
    %52 = vmatprep.subr.mxu0 0.0
    %53 = vmatpush1.msra.mxu0 0.0
    %54 = vmatprep.subr.mxu0 0.0
    %55 = vmatpush1.msra.mxu0 0.0
    %56 = vmatprep.subr.mxu0 0.0
    %57 = vmatpush1.msra.mxu0 0.0
    %58 = vmatprep.subr.mxu0 0.0
    %59 = vmatpush1.msra.mxu0 0.0
    %60 = vmatprep.subr.mxu0 0.0
    %61 = vmatpush1.msra.mxu0 0.0
    %62 = vmatprep.subr.mxu0 0.0
    %63 = vmatpush1.msra.mxu0 0.0
    %64 = vmatprep.subr.mxu0 %v35
    %65 = vmatpush1.msra.mxu0 %v34
    %66 = vmatprep.subr.mxu0 %v33
    %67 = vmatpush1.msra.mxu0 %v32
    %68 = vmatprep.subr.mxu0 %v31
    %69 = vmatpush1.msra.mxu0 %v30
    %70 = vmatprep.subr.mxu0 %v29
    %71 = vmatpush1.msra.mxu0 %v28
    %72 = vmatprep.subr.mxu0 0.0
    %73 = vmatpush2.msra.mxu0 0.0
    %74 = vmatprep.subr.mxu0 0.0
    %75 = vmatpush2.msra.mxu0 0.0
    %76 = vmatprep.subr.mxu0 0.0
    %77 = vmatpush2.msra.mxu0 0.0
    %78 = vmatprep.subr.mxu0 0.0
    %79 = vmatpush2.msra.mxu0 0.0
    %80 = vmatprep.subr.mxu0 0.0
    %81 = vmatpush2.msra.mxu0 0.0
    %82 = vmatprep.subr.mxu0 0.0
    %83 = vmatpush2.msra.mxu0 0.0
    %84 = vmatprep.subr.mxu0 0.0
    %85 = vmatpush2.msra.mxu0 0.0
    %86 = vmatprep.subr.mxu0 0.0
    %87 = vmatpush2.msra.mxu0 0.0
    %88 = vmatprep.subr.mxu0 0.0
    %89 = vmatpush2.msra.mxu0 0.0
    %90 = vmatprep.subr.mxu0 0.0
    %91 = vmatpush2.msra.mxu0 0.0
    %92 = vmatprep.subr.mxu0 0.0
    %93 = vmatpush2.msra.mxu0 0.0
    %94 = vmatprep.subr.mxu0 0.0
    %95 = vmatpush2.msra.mxu0 0.0
    %96 = vmatprep.subr.mxu0 0.0
    %97 = vmatpush2.msra.mxu0 0.0
    %98 = vmatprep.subr.mxu0 0.0
    %99 = vmatpush2.msra.mxu0 0.0
    %100 = vmatprep.subr.mxu0 0.0
    %101 = vmatpush2.msra.mxu0 0.0
    %102 = vmatprep.subr.mxu0 0.0
    %103 = vmatpush2.msra.mxu0 0.0
    %104 = vmatprep.mubr.f32.mxu0 0.0
    %105 = vmatmul.mubr.f32.gmra.mxu0 %v38
    %v106 = vpop.f32.mrf.mxu0
    %v107 = vadd.f32 0.0, %v106
    %v108 = vpop.f32.mrf.mxu0
    %v109 = vadd.f32 0.0, %v108
    %110 = vdwg.mxu0
    %v111 = vrot.slane %v107, 4
    %v112 = vadd.f32 %v107, %v111
    %v113 = vrot.slane %v112, 2
    %v114 = vadd.f32 %v112, %v113
    %v115 = vrot.slane %v114, 1
    %v116 = vadd.f32 %v114, %v115
    %v117 = vrot.slane %v109, 4
    %v118 = vadd.f32 %v109, %v117
    %v119 = vrot.slane %v118, 2
    %v120 = vadd.f32 %v118, %v119
    %v121 = vrot.slane %v120, 1
    %v122 = vadd.f32 %v120, %v121
    %v123 = vrcp.pop 8.0
    %v124 = vmul.f32 %v116, %v123
    %v125 = vmul.f32 %v122, %v123
    %v126 = vmul.f32 %v107, %v107
    %v127 = vmul.f32 %v109, %v109
    %v128 = vrot.slane %v126, 4
    %v129 = vadd.f32 %v126, %v128
    %v130 = vrot.slane %v129, 2
    %v131 = vadd.f32 %v129, %v130
    %v132 = vrot.slane %v131, 1
    %v133 = vadd.f32 %v131, %v132
    %v134 = vrot.slane %v127, 4
    %v135 = vadd.f32 %v127, %v134
    %v136 = vrot.slane %v135, 2
    %v137 = vadd.f32 %v135, %v136
    %v138 = vrot.slane %v137, 1
    %v139 = vadd.f32 %v137, %v138
    %v140 = vmul.f32 %v133, %v123
    %v141 = vmul.f32 %v139, %v123
    %v142 = vmul.f32 %v124, %v124
    %v143 = vmul.f32 %v125, %v125
    %v144 = vsub.f32 %v140, %v142
    %v145 = vsub.f32 %v141, %v143
    %v146 = vld [vmem:[%s3] ss:$2 sm:$0x3]
    %v147 = vadd.f32 %v144, 1e-05
    %v148 = vadd.f32 %v145, 1e-05
    %v149 = vrsqrt.pop %v147
    %v150 = vrsqrt.pop %v148
    %v153 = vcombine.low %v149, %v150
    %v155 = vunpack.c.l.s4 1966171168
    %v156 = vunpack.c.0.s8 %v155
    %v157 = vlaneseq
    %v158 = vshrl.u32 %v157, 7
    %v159 = vsub.s32 %v156, %v158
    %v160 = vrot.slane %v153, %v159
    %v162 = vunpack.c.l.s4 1966171168
    %v163 = vunpack.c.0.s8 %v162
    %v164 = vlaneseq
    %v165 = vshrl.u32 %v164, 7
    %v166 = vsub.s32 %v163, %v165
    %v167 = vrot.slane %v160, %v166
    %v169 = vmul.f32 %v146, %v167
    %v170 = vsub.f32 %v107, %v124
    %v171 = vsub.f32 %v109, %v125
    %v173 = vlaneseq
    %v174 = vshrl.u32 %v173, 7
    %v175 = vsub.s32 0, %v174
    %v176 = vrot.slane %v169, %v175
    %v177 = vlaneseq
    %v178 = vshrl.u32 %v177, 7
    %v179 = vsub.s32 1, %v178
    %v180 = vrot.slane %v169, %v179
    %v183 = vmul.f32 %v170, %v176
    %v184 = vmul.f32 %v171, %v180
    %s185 = scalar_lea.vmem %s3, 1
    %v186 = vld [vmem:[%s185] ss:$2 sm:$0x3]
    %v188 = vlaneseq
    %v189 = vshrl.u32 %v188, 7
    %v190 = vsub.s32 0, %v189
    %v191 = vrot.slane %v186, %v190
    %v192 = vlaneseq
    %v193 = vshrl.u32 %v192, 7
    %v194 = vsub.s32 1, %v193
    %v195 = vrot.slane %v186, %v194
    %v198 = vadd.f32 %v183, %v191
    %v199 = vadd.f32 %v184, %v195
    %v200 = vmax.f32 %v198, 0.0
    %v201 = vmax.f32 %v199, 0.0
    %v202 = vld [vmem:[%s4] sm:$0xff]
    %v203 = vld [vmem:[%s4 + $0x8] sm:$0xff]
    %v204 = vld [vmem:[%s4 + $0x10] sm:$0xff]
    %v205 = vld [vmem:[%s4 + $0x18] sm:$0xff]
    %v206 = vld [vmem:[%s4 + $0x20] sm:$0xff]
    %v207 = vld [vmem:[%s4 + $0x28] sm:$0xff]
    %v208 = vld [vmem:[%s4 + $0x30] sm:$0xff]
    %v209 = vld [vmem:[%s4 + $0x38] sm:$0xff]
    %v210 = vld [vmem:[%s4 + $0x40] sm:$0xff]
    %v211 = vld [vmem:[%s4 + $0x48] sm:$0xff]
    %v212 = vld [vmem:[%s4 + $0x50] sm:$0xff]
    %v213 = vld [vmem:[%s4 + $0x58] sm:$0xff]
    %v214 = vld [vmem:[%s4 + $0x60] sm:$0xff]
    %v215 = vld [vmem:[%s4 + $0x68] sm:$0xff]
    %v216 = vld [vmem:[%s4 + $0x70] sm:$0xff]
    %v217 = vld [vmem:[%s4 + $0x78] sm:$0xff]
    %v218 = vld [vmem:[%s4 + $0x80] sm:$0xff]
    %v219 = vld [vmem:[%s4 + $0x88] sm:$0xff]
    %v220 = vld [vmem:[%s4 + $0x90] sm:$0xff]
    %v221 = vld [vmem:[%s4 + $0x98] sm:$0xff]
    %v222 = vld [vmem:[%s4 + $0xa0] sm:$0xff]
    %v223 = vld [vmem:[%s4 + $0xa8] sm:$0xff]
    %v224 = vld [vmem:[%s4 + $0xb0] sm:$0xff]
    %v225 = vld [vmem:[%s4 + $0xb8] sm:$0xff]
    %v226 = vld [vmem:[%s4 + $0xc0] sm:$0xff]
    %v227 = vld [vmem:[%s4 + $0xc8] sm:$0xff]
    %v228 = vld [vmem:[%s4 + $0xd0] sm:$0xff]
    %v229 = vld [vmem:[%s4 + $0xd8] sm:$0xff]
    %v230 = vld [vmem:[%s4 + $0xe0] sm:$0xff]
    %v231 = vld [vmem:[%s4 + $0xe8] sm:$0xff]
    %v232 = vld [vmem:[%s4 + $0xf0] sm:$0xff]
    %v233 = vld [vmem:[%s4 + $0xf8] sm:$0xff]
    %234 = vmatprep.subr.mxu0 0.0
    %235 = vmatpush1.msra.mxu0 %v217
    %236 = vmatprep.subr.mxu0 0.0
    %237 = vmatpush1.msra.mxu0 %v216
    %238 = vmatprep.subr.mxu0 0.0
    %239 = vmatpush1.msra.mxu0 %v215
    %240 = vmatprep.subr.mxu0 0.0
    %241 = vmatpush1.msra.mxu0 %v214
    %242 = vmatprep.subr.mxu0 0.0
    %243 = vmatpush1.msra.mxu0 %v213
    %244 = vmatprep.subr.mxu0 0.0
    %245 = vmatpush1.msra.mxu0 %v212
    %246 = vmatprep.subr.mxu0 0.0
    %247 = vmatpush1.msra.mxu0 %v211
    %248 = vmatprep.subr.mxu0 0.0
    %249 = vmatpush1.msra.mxu0 %v210
    %250 = vmatprep.subr.mxu0 0.0
    %251 = vmatpush1.msra.mxu0 %v209
    %252 = vmatprep.subr.mxu0 0.0
    %253 = vmatpush1.msra.mxu0 %v208
    %254 = vmatprep.subr.mxu0 0.0
    %255 = vmatpush1.msra.mxu0 %v207
    %256 = vmatprep.subr.mxu0 0.0
    %257 = vmatpush1.msra.mxu0 %v206
    %258 = vmatprep.subr.mxu0 0.0
    %259 = vmatpush1.msra.mxu0 %v205
    %260 = vmatprep.subr.mxu0 0.0
    %261 = vmatpush1.msra.mxu0 %v204
    %262 = vmatprep.subr.mxu0 0.0
    %263 = vmatpush1.msra.mxu0 %v203
    %264 = vmatprep.subr.mxu0 0.0
    %265 = vmatpush1.msra.mxu0 %v202
    %266 = vmatprep.subr.mxu0 0.0
    %267 = vmatpush2.msra.mxu0 %v233
    %268 = vmatprep.subr.mxu0 0.0
    %269 = vmatpush2.msra.mxu0 %v232
    %270 = vmatprep.subr.mxu0 0.0
    %271 = vmatpush2.msra.mxu0 %v231
    %272 = vmatprep.subr.mxu0 0.0
    %273 = vmatpush2.msra.mxu0 %v230
    %274 = vmatprep.subr.mxu0 0.0
    %275 = vmatpush2.msra.mxu0 %v229
    %276 = vmatprep.subr.mxu0 0.0
    %277 = vmatpush2.msra.mxu0 %v228
    %278 = vmatprep.subr.mxu0 0.0
    %279 = vmatpush2.msra.mxu0 %v227
    %280 = vmatprep.subr.mxu0 0.0
    %281 = vmatpush2.msra.mxu0 %v226
    %282 = vmatprep.subr.mxu0 0.0
    %283 = vmatpush2.msra.mxu0 %v225
    %284 = vmatprep.subr.mxu0 0.0
    %285 = vmatpush2.msra.mxu0 %v224
    %286 = vmatprep.subr.mxu0 0.0
    %287 = vmatpush2.msra.mxu0 %v223
    %288 = vmatprep.subr.mxu0 0.0
    %289 = vmatpush2.msra.mxu0 %v222
    %290 = vmatprep.subr.mxu0 0.0
    %291 = vmatpush2.msra.mxu0 %v221
    %292 = vmatprep.subr.mxu0 0.0
    %293 = vmatpush2.msra.mxu0 %v220
    %294 = vmatprep.subr.mxu0 0.0
    %295 = vmatpush2.msra.mxu0 %v219
    %296 = vmatprep.subr.mxu0 0.0
    %297 = vmatpush2.msra.mxu0 %v218
    %298 = vmatprep.mubr.f32.mxu0 %v201
    %299 = vmatmul.mubr.f32.gmra.mxu0 %v200
    %v300 = vpop.f32.mrf.mxu0
    %v301 = vadd.f32 0.0, %v300
    %v302 = vpop.f32.mrf.mxu0
    %303 = vdwg.mxu0
    %vm304 = vcmask 523264
    %v305 = vsel %vm304, %v301, 0.0
    %v306 = vrot.slane %v305, 4
    %v307 = vadd.f32 %v305, %v306
    %v308 = vrot.slane %v307, 2
    %v309 = vadd.f32 %v307, %v308
    %v310 = vrot.slane %v309, 1
    %v311 = vadd.f32 %v309, %v310
    %v312 = vmul.f32 %v311, %v123
    %v313 = vmul.f32 %v301, %v301
    %v314 = vsel %vm304, %v313, 0.0
    %v315 = vrot.slane %v314, 4
    %v316 = vadd.f32 %v314, %v315
    %v317 = vrot.slane %v316, 2
    %v318 = vadd.f32 %v316, %v317
    %v319 = vrot.slane %v318, 1
    %v320 = vadd.f32 %v318, %v319
    %v321 = vmul.f32 %v320, %v123
    %v322 = vmul.f32 %v312, %v312
    %v323 = vsub.f32 %v321, %v322
    %v324 = vld [vmem:[%s5] sm:$0x1]
    %v325 = vadd.f32 %v323, 1e-05
    %v326 = vrsqrt.pop %v325
    %v327 = vmul.f32 %v324, %v326
    %v328 = vsub.f32 %v301, %v312
    %v329 = vlaneseq
    %v330 = vshrl.u32 %v329, 7
    %v331 = vsub.s32 0, %v330
    %v332 = vrot.slane %v327, %v331
    %v333 = vmul.f32 %v328, %v332
    %v334 = vld [vmem:[%s5 + $0x1] sm:$0x1]
    %v335 = vlaneseq
    %v336 = vshrl.u32 %v335, 7
    %v337 = vsub.s32 0, %v336
    %v338 = vrot.slane %v334, %v337
    %v339 = vadd.f32 %v333, %v338
    %v340 = vmax.f32 %v339, 0.0
    %v341 = vld [vmem:[%s6] sm:$0xff]
    %v342 = vld [vmem:[%s6 + $0x8] sm:$0xff]
    %v343 = vld [vmem:[%s6 + $0x10] sm:$0xff]
    %v344 = vld [vmem:[%s6 + $0x18] sm:$0xff]
    %v345 = vld [vmem:[%s6 + $0x20] sm:$0xff]
    %v346 = vld [vmem:[%s6 + $0x28] sm:$0xff]
    %v347 = vld [vmem:[%s6 + $0x30] sm:$0xff]
    %v348 = vld [vmem:[%s6 + $0x38] sm:$0xff]
    %v349 = vld [vmem:[%s1] sm:$0xff]
    %v351 = vsel %vm304, %v340, 0
    %353 = vmatprep.subr.mxu0 0.0
    %354 = vmatpush1.msra.mxu0 0.0
    %355 = vmatprep.subr.mxu0 0.0
    %356 = vmatpush1.msra.mxu0 0.0
    %357 = vmatprep.subr.mxu0 0.0
    %358 = vmatpush1.msra.mxu0 0.0
    %359 = vmatprep.subr.mxu0 0.0
    %360 = vmatpush1.msra.mxu0 0.0
    %361 = vmatprep.subr.mxu0 0.0
    %362 = vmatpush1.msra.mxu0 0.0
    %363 = vmatprep.subr.mxu0 0.0
    %364 = vmatpush1.msra.mxu0 0.0
    %365 = vmatprep.subr.mxu0 0.0
    %366 = vmatpush1.msra.mxu0 0.0
    %367 = vmatprep.subr.mxu0 0.0
    %368 = vmatpush1.msra.mxu0 0.0
    %369 = vmatprep.subr.mxu0 0.0
    %370 = vmatpush1.msra.mxu0 %v348
    %371 = vmatprep.subr.mxu0 0.0
    %372 = vmatpush1.msra.mxu0 %v347
    %373 = vmatprep.subr.mxu0 0.0
    %374 = vmatpush1.msra.mxu0 %v346
    %375 = vmatprep.subr.mxu0 0.0
    %376 = vmatpush1.msra.mxu0 %v345
    %377 = vmatprep.subr.mxu0 0.0
    %378 = vmatpush1.msra.mxu0 %v344
    %379 = vmatprep.subr.mxu0 0.0
    %380 = vmatpush1.msra.mxu0 %v343
    %381 = vmatprep.subr.mxu0 0.0
    %382 = vmatpush1.msra.mxu0 %v342
    %383 = vmatprep.subr.mxu0 0.0
    %384 = vmatpush1.msra.mxu0 %v341
    %385 = vmatprep.subr.mxu0 0.0
    %386 = vmatpush2.msra.mxu0 0.0
    %387 = vmatprep.subr.mxu0 0.0
    %388 = vmatpush2.msra.mxu0 0.0
    %389 = vmatprep.subr.mxu0 0.0
    %390 = vmatpush2.msra.mxu0 0.0
    %391 = vmatprep.subr.mxu0 0.0
    %392 = vmatpush2.msra.mxu0 0.0
    %393 = vmatprep.subr.mxu0 0.0
    %394 = vmatpush2.msra.mxu0 0.0
    %395 = vmatprep.subr.mxu0 0.0
    %396 = vmatpush2.msra.mxu0 0.0
    %397 = vmatprep.subr.mxu0 0.0
    %398 = vmatpush2.msra.mxu0 0.0
    %399 = vmatprep.subr.mxu0 0.0
    %400 = vmatpush2.msra.mxu0 0.0
    %401 = vmatprep.subr.mxu0 0.0
    %402 = vmatpush2.msra.mxu0 0.0
    %403 = vmatprep.subr.mxu0 0.0
    %404 = vmatpush2.msra.mxu0 0.0
    %405 = vmatprep.subr.mxu0 0.0
    %406 = vmatpush2.msra.mxu0 0.0
    %407 = vmatprep.subr.mxu0 0.0
    %408 = vmatpush2.msra.mxu0 0.0
    %409 = vmatprep.subr.mxu0 0.0
    %410 = vmatpush2.msra.mxu0 0.0
    %411 = vmatprep.subr.mxu0 0.0
    %412 = vmatpush2.msra.mxu0 0.0
    %413 = vmatprep.subr.mxu0 0.0
    %414 = vmatpush2.msra.mxu0 0.0
    %415 = vmatprep.subr.mxu0 0.0
    %416 = vmatpush2.msra.mxu0 0.0
    %417 = vmatprep.mubr.f32.mxu0 0.0
    %418 = vmatmul.mubr.f32.gmra.mxu0 %v351
    %v419 = vpop.f32.mrf.mxu0
    %v420 = vadd.f32 %v349, %v419
    %v421 = vpop.f32.mrf.mxu0
    %422 = vdwg.mxu0
    %v423 = vxor.u32 %v420, 2147483648
    %v424 = vmul.f32 %v423, 1.442695
    %v425 = vpow.pop %v424
    %v426 = vadd.f32 %v425, 1.0
    %v427 = vrcp.pop %v426
    %v428 = vmul.f32 1.0, %v427
    %429 = vst [vmem:[#allocation2] sm:$0xff] %v428
    // Predicated region
    $region30: #{tpu_custom_call.1} parent=1 // pred_check
      _
    $region31: #{tpu_custom_call.1} parent=1 // pred_check_branch
      %431 = sbr.rel (0) target = $region33
    $region32: #{tpu_custom_call.1} parent=1 // pred_region
      %s433 = ssub.s32 128, 128
      %434 = vsyncadd [#allocation3], %s433
      %s436 = sshll.u32 [#allocation2], 4
      %s437 = int_to_ptr.vmem [resolvable:$true] %s436
      %439 = dma.vmem_to_hbm [thread:$0]  %s437, 128, %s7, [#allocation3]
    $region33: #{tpu_custom_call.1} parent=1 // pred_fallthru
      _
    // Predicated region
    $region34: #{tpu_custom_call.1} parent=1 // pred_check
      _
    $region35: #{tpu_custom_call.1} parent=1 // pred_check_branch
      %441 = sbr.rel (0) target = $region37
    $region36: #{tpu_custom_call.1} parent=1 // pred_region
      %442 = dma.done [#allocation3], 128
    $region37: #{tpu_custom_call.1} parent=1 // pred_fallthru
      _
    %443 = vsyncpa [#allocation3], 1

</llo_original>
